<compile_context>
chip_gen: v5e
topology: v5e:2x2
jax: 0.10.0
libtpu: 0.0.40
codegen_flags: <defaults>
</compile_context>

<pallas_src>
import functools

import jax
import jax.numpy as jnp
import numpy as np
from jax.experimental import pallas as pl
from jax.experimental.pallas import tpu as pltpu


def _basic_block_kernel(x_ref, w1_ref, w2_ref, s1_ref, b1_ref, s2_ref, b2_ref,
                        o_ref, pbuf_ref, col_ref, *, H, W):
    # Per grid step (one image):
    #   x_ref   : (1, C, H*W)        input, channels in sublanes, H*W in lanes
    #   w1_ref  : (C, 9*C)           conv1 weights, [co, (dy*3+dx)*Cin + ci]
    #   w2_ref  : (C, 9*C)           conv2 weights, same layout
    #   s*/b*   : (C, 1)             folded BN scale / bias
    #   o_ref   : (1, C, H*W)
    #   pbuf_ref: (C, H*W + 2*(W+1)) flattened zero-halo staging buffer (VMEM)
    #   col_ref : (9*C, H*W)         im2col matrix (contraction dim in sublanes)
    C = x_ref.shape[1]
    HW = H * W
    PAD = W + 1

    x = x_ref[0].astype(jnp.float32)          # (C, HW)
    w1 = w1_ref[...].astype(jnp.float32)      # (C, 9C)   hoisted, loaded once
    w2 = w2_ref[...].astype(jnp.float32)
    s1, b1 = s1_ref[...], b1_ref[...]          # (C, 1)
    s2, b2 = s2_ref[...], b2_ref[...]

    # Horizontal-edge masks (vertical out-of-bounds taps read zeros from the
    # halo of pbuf). Computed once, shared by both convolutions.
    xs = jax.lax.broadcasted_iota(jnp.int32, (1, HW), 1) % W
    mask_l = (xs >= 1).astype(jnp.float32)       # valid lanes for dx-1 == -1
    mask_r = (xs <= W - 2).astype(jnp.float32)   # valid lanes for dx-1 == +1

    # Zero only the halo strips; the interior is fully overwritten each conv.
    pbuf_ref[:, :PAD] = jnp.zeros((C, PAD), jnp.float32)
    pbuf_ref[:, PAD + HW:] = jnp.zeros((C, PAD), jnp.float32)

    def conv3x3(act, w_mat):
        # act: (C, HW) f32 ; w_mat: (Cout, 9*C). Returns (Cout, HW) f32.
        pbuf_ref[:, PAD:PAD + HW] = act
        for dy in range(3):
            for dx in range(3):
                off = (dy - 1) * W + (dx - 1)
                piece = pbuf_ref[:, PAD + off:PAD + off + HW]   # shifted view
                if dx == 0:
                    piece = piece * mask_l
                elif dx == 2:
                    piece = piece * mask_r
                t = dy * 3 + dx
                col_ref[t * C:(t + 1) * C, :] = piece
        # Single fused contraction: K = 9*Cin, output lane-dense (Cout, HW).
        return jnp.dot(w_mat, col_ref[...], preferred_element_type=jnp.float32)

    h = conv3x3(x, w1)
    h = jnp.maximum(h * s1 + b1, 0.0)            # bn1 + relu
    h = conv3x3(h, w2)
    h = jnp.maximum(h * s2 + b2 + x, 0.0)        # bn2 + residual + relu
    o_ref[0] = h.astype(o_ref.dtype)


@jax.jit
def basic_block2d(x_nchw, w1_oihw, w2_oihw, scale1, bias1, scale2, bias2):
    """x_nchw: (N,C,H,W) f32; conv weights OIHW; BN folded to scale/bias (C,)."""
    N, C, H, W = x_nchw.shape
    Cout = w1_oihw.shape[0]
    assert Cout == C, "stride=1 / downsample=None requires planes == inplanes"
    HW = H * W

    # Free relayouts on the host side: flatten spatial dims; reorder conv
    # weights OIHW -> (Cout, 9*Cin) with column index (dy*3+dx)*Cin + ci.
    x2 = x_nchw.reshape(N, C, HW)
    w1m = jnp.transpose(w1_oihw, (0, 2, 3, 1)).reshape(Cout, 9 * C)
    w2m = jnp.transpose(w2_oihw, (0, 2, 3, 1)).reshape(Cout, 9 * Cout)
    s1 = scale1.reshape(C, 1).astype(jnp.float32)
    b1 = bias1.reshape(C, 1).astype(jnp.float32)
    s2 = scale2.reshape(C, 1).astype(jnp.float32)
    b2 = bias2.reshape(C, 1).astype(jnp.float32)

    kernel = pl.pallas_call(
        functools.partial(_basic_block_kernel, H=H, W=W),
        out_shape=jax.ShapeDtypeStruct((N, C, HW), x_nchw.dtype),
        grid_spec=pltpu.PrefetchScalarGridSpec(
            num_scalar_prefetch=0,
            grid=(N,),
            in_specs=[
                pl.BlockSpec((1, C, HW), lambda n: (n, 0, 0)),       # x
                pl.BlockSpec((Cout, 9 * C), lambda n: (0, 0)),       # w1
                pl.BlockSpec((Cout, 9 * Cout), lambda n: (0, 0)),    # w2
                pl.BlockSpec((Cout, 1), lambda n: (0, 0)),           # s1
                pl.BlockSpec((Cout, 1), lambda n: (0, 0)),           # b1
                pl.BlockSpec((Cout, 1), lambda n: (0, 0)),           # s2
                pl.BlockSpec((Cout, 1), lambda n: (0, 0)),           # b2
            ],
            out_specs=pl.BlockSpec((1, Cout, HW), lambda n: (n, 0, 0)),
            scratch_shapes=[
                pltpu.VMEM((C, HW + 2 * (W + 1)), jnp.float32),      # halo buf
                pltpu.VMEM((9 * C, HW), jnp.float32),                # im2col
            ],
        ),
        compiler_params=pltpu.CompilerParams(
            dimension_semantics=("parallel",)),
    )
    out = kernel(x2, w1m, w2m, s1, b1, s2, b2)
    return out.reshape(N, C, H, W)


def _reference(x, w1, w2, scale1, bias1, scale2, bias2):
    """Pure-JAX reference (lax conv, NCHW) for correctness checking."""
    dn = ("NCHW", "OIHW", "NCHW")
    out = jax.lax.conv_general_dilated(x, w1, (1, 1), "SAME",
                                       dimension_numbers=dn)
    out = out * scale1.reshape(1, -1, 1, 1) + bias1.reshape(1, -1, 1, 1)
    out = jnp.maximum(out, 0.0)
    out = jax.lax.conv_general_dilated(out, w2, (1, 1), "SAME",
                                       dimension_numbers=dn)
    out = out * scale2.reshape(1, -1, 1, 1) + bias2.reshape(1, -1, 1, 1)
    return jnp.maximum(out + x, 0.0)


if __name__ == "__main__":
    # Small shapes consistent with the module: inplanes = planes = 4.
    N, C, H, W = 2, 4, 16, 16
    key = jax.random.PRNGKey(0)
    kx, kw1, kw2 = jax.random.split(key, 3)

    x = jax.random.normal(kx, (N, C, H, W), dtype=jnp.float32)
    w1 = 0.1 * jax.random.normal(kw1, (C, C, 3, 3), dtype=jnp.float32)
    w2 = 0.1 * jax.random.normal(kw2, (C, C, 3, 3), dtype=jnp.float32)

    # BatchNorm (inference mode), deterministic params, folded to per-channel
    # scale/bias: y = x * gamma/sqrt(var+eps) + (beta - mean*scale)
    eps = 1e-5
    ch = jnp.arange(C, dtype=jnp.float32)
    gamma1, beta1 = 1.0 + 0.10 * ch, 0.05 * ch
    mean1, var1 = 0.01 * ch, 1.0 + 0.02 * ch
    gamma2, beta2 = 1.0 - 0.05 * ch, -0.03 * ch
    mean2, var2 = -0.02 * ch, 1.0 + 0.01 * ch

    scale1 = gamma1 / jnp.sqrt(var1 + eps)
    bias1 = beta1 - mean1 * scale1
    scale2 = gamma2 / jnp.sqrt(var2 + eps)
    bias2 = beta2 - mean2 * scale2

    out = basic_block2d(x, w1, w2, scale1, bias1, scale2, bias2)
    out = jax.block_until_ready(out)

    ref = _reference(x, w1, w2, scale1, bias1, scale2, bias2)
    np.testing.assert_allclose(np.asarray(out), np.asarray(ref),
                               rtol=1e-3, atol=1e-3)
    print("KERNEL_OK")
</pallas_src>

<mosaic_0001>
module attributes {stable_mosaic.version = 11 : i64} {
  func.func @_basic_block_kernel(%arg0: i32, %arg1: memref<1x4x256xf32, #tpu.memory_space<vmem>>, %arg2: memref<4x36xf32, #tpu.memory_space<vmem>>, %arg3: memref<4x36xf32, #tpu.memory_space<vmem>>, %arg4: memref<4x1xf32, #tpu.memory_space<vmem>>, %arg5: memref<4x1xf32, #tpu.memory_space<vmem>>, %arg6: memref<4x1xf32, #tpu.memory_space<vmem>>, %arg7: memref<4x1xf32, #tpu.memory_space<vmem>>, %arg8: memref<1x4x256xf32, #tpu.memory_space<vmem>>, %arg9: memref<4x290xf32, #tpu.memory_space<vmem>>, %arg10: memref<36x256xf32, #tpu.memory_space<vmem>>) attributes {dimension_semantics = [#tpu.dimension_semantics<parallel>], iteration_bounds = array<i64: 2>, scalar_prefetch = 0 : i64, scratch_operands = 2 : i64, tpu.core_type = #tpu.core_type<tc>, window_params = [{transform_indices = @transform_0, window_bounds = array<i64: 1, 4, 256>}, {pipeline_mode = #tpu.pipeline_mode<synchronous>, transform_indices = @transform_1, window_bounds = array<i64: 4, 36>}, {pipeline_mode = #tpu.pipeline_mode<synchronous>, transform_indices = @transform_2, window_bounds = array<i64: 4, 36>}, {pipeline_mode = #tpu.pipeline_mode<synchronous>, transform_indices = @transform_3, window_bounds = array<i64: 4, 1>}, {pipeline_mode = #tpu.pipeline_mode<synchronous>, transform_indices = @transform_4, window_bounds = array<i64: 4, 1>}, {pipeline_mode = #tpu.pipeline_mode<synchronous>, transform_indices = @transform_5, window_bounds = array<i64: 4, 1>}, {pipeline_mode = #tpu.pipeline_mode<synchronous>, transform_indices = @transform_6, window_bounds = array<i64: 4, 1>}, {transform_indices = @transform_7, window_bounds = array<i64: 1, 4, 256>}]} {
    %c0 = arith.constant 0 : index
    %c0_0 = arith.constant 0 : index
    %c0_1 = arith.constant 0 : index
    %0 = vector.load %arg1[%c0, %c0_0, %c0_1] : memref<1x4x256xf32, #tpu.memory_space<vmem>>, vector<1x4x256xf32>
    %1 = vector.shape_cast %0 : vector<1x4x256xf32> to vector<4x256xf32>
    %c0_2 = arith.constant 0 : index
    %c0_3 = arith.constant 0 : index
    %2 = vector.load %arg2[%c0_2, %c0_3] : memref<4x36xf32, #tpu.memory_space<vmem>>, vector<4x36xf32>
    %c0_4 = arith.constant 0 : index
    %c0_5 = arith.constant 0 : index
    %3 = vector.load %arg3[%c0_4, %c0_5] : memref<4x36xf32, #tpu.memory_space<vmem>>, vector<4x36xf32>
    %c0_6 = arith.constant 0 : index
    %c0_7 = arith.constant 0 : index
    %4 = vector.load %arg4[%c0_6, %c0_7] : memref<4x1xf32, #tpu.memory_space<vmem>>, vector<4x1xf32>
    %c0_8 = arith.constant 0 : index
    %c0_9 = arith.constant 0 : index
    %5 = vector.load %arg5[%c0_8, %c0_9] : memref<4x1xf32, #tpu.memory_space<vmem>>, vector<4x1xf32>
    %c0_10 = arith.constant 0 : index
    %c0_11 = arith.constant 0 : index
    %6 = vector.load %arg6[%c0_10, %c0_11] : memref<4x1xf32, #tpu.memory_space<vmem>>, vector<4x1xf32>
    %c0_12 = arith.constant 0 : index
    %c0_13 = arith.constant 0 : index
    %7 = vector.load %arg7[%c0_12, %c0_13] : memref<4x1xf32, #tpu.memory_space<vmem>>, vector<4x1xf32>
    %8 = tpu.iota {dimensions = array<i32: 1>} : vector<1x256xi32>
    %c16_i32 = arith.constant 16 : i32
    %c0_i32 = arith.constant 0 : i32
    %9 = arith.cmpi eq, %c16_i32, %c0_i32 : i32
    %c1_i32 = arith.constant 1 : i32
    %10 = arith.select %9, %c1_i32, %c16_i32 : i32
    %11 = vector.broadcast %10 : i32 to vector<1x256xi32>
    %12 = arith.remsi %8, %11 : vector<1x256xi32>
    %c0_i32_14 = arith.constant 0 : i32
    %13 = vector.broadcast %c0_i32_14 : i32 to vector<1x256xi32>
    %14 = arith.cmpi ne, %12, %13 : vector<1x256xi32>
    %c0_i32_15 = arith.constant 0 : i32
    %15 = vector.broadcast %c0_i32_15 : i32 to vector<1x256xi32>
    %16 = arith.cmpi slt, %12, %15 : vector<1x256xi32>
    %c0_i32_16 = arith.constant 0 : i32
    %17 = arith.cmpi slt, %10, %c0_i32_16 : i32
    %18 = vector.broadcast %17 : i1 to vector<1x256xi1>
    %19 = vector.broadcast %18 : vector<1x256xi1> to vector<1x256xi1>
    %20 = arith.xori %16, %19 : vector<1x256xi1>
    %21 = arith.andi %20, %14 : vector<1x256xi1>
    %22 = vector.broadcast %10 : i32 to vector<1x256xi32>
    %23 = arith.addi %12, %22 : vector<1x256xi32>
    %24 = arith.select %21, %23, %12 : vector<1x256xi1>, vector<1x256xi32>
    %c1_i32_17 = arith.constant 1 : i32
    %25 = vector.broadcast %c1_i32_17 : i32 to vector<1x256xi32>
    %26 = arith.cmpi sge, %24, %25 : vector<1x256xi32>
    %27 = arith.extui %26 : vector<1x256xi1> to vector<1x256xi32>
    %28 = arith.sitofp %27 : vector<1x256xi32> to vector<1x256xf32>
    %c14_i32 = arith.constant 14 : i32
    %29 = vector.broadcast %c14_i32 : i32 to vector<1x256xi32>
    %30 = arith.cmpi sle, %24, %29 : vector<1x256xi32>
    %31 = arith.extui %30 : vector<1x256xi1> to vector<1x256xi32>
    %32 = arith.sitofp %31 : vector<1x256xi32> to vector<1x256xf32>
    %cst = arith.constant 0.000000e+00 : f32
    %33 = vector.broadcast %cst : f32 to vector<4x17xf32>
    %c0_18 = arith.constant 0 : index
    %c0_19 = arith.constant 0 : index
    %34 = vector.load %arg9[%c0_18, %c0_19] : memref<4x290xf32, #tpu.memory_space<vmem>>, vector<4x17xf32>
    tpu.vector_store %arg9[%c0_18, %c0_19], %33 {strides = array<i32>} : memref<4x290xf32, #tpu.memory_space<vmem>>, vector<4x17xf32>,
    %cst_20 = arith.constant 0.000000e+00 : f32
    %35 = vector.broadcast %cst_20 : f32 to vector<4x17xf32>
    %c0_21 = arith.constant 0 : index
    %c273 = arith.constant 273 : index
    %36 = vector.load %arg9[%c0_21, %c273] : memref<4x290xf32, #tpu.memory_space<vmem>>, vector<4x17xf32>
    tpu.vector_store %arg9[%c0_21, %c273], %35 {strides = array<i32>} : memref<4x290xf32, #tpu.memory_space<vmem>>, vector<4x17xf32>,
    %c0_22 = arith.constant 0 : index
    %c17 = arith.constant 17 : index
    %37 = vector.load %arg9[%c0_22, %c17] : memref<4x290xf32, #tpu.memory_space<vmem>>, vector<4x256xf32>
    tpu.vector_store %arg9[%c0_22, %c17], %1 {strides = array<i32>} : memref<4x290xf32, #tpu.memory_space<vmem>>, vector<4x256xf32>,
    %c0_23 = arith.constant 0 : index
    %c0_24 = arith.constant 0 : index
    %38 = vector.load %arg9[%c0_23, %c0_24] : memref<4x290xf32, #tpu.memory_space<vmem>>, vector<4x256xf32>
    %39 = vector.broadcast %28 : vector<1x256xf32> to vector<4x256xf32>
    %40 = arith.mulf %38, %39 : vector<4x256xf32>
    %c0_25 = arith.constant 0 : index
    %c0_26 = arith.constant 0 : index
    %41 = vector.load %arg10[%c0_25, %c0_26] : memref<36x256xf32, #tpu.memory_space<vmem>>, vector<4x256xf32>
    tpu.vector_store %arg10[%c0_25, %c0_26], %40 {strides = array<i32>} : memref<36x256xf32, #tpu.memory_space<vmem>>, vector<4x256xf32>,
    %c0_27 = arith.constant 0 : index
    %c1 = arith.constant 1 : index
    %42 = vector.load %arg9[%c0_27, %c1] : memref<4x290xf32, #tpu.memory_space<vmem>>, vector<4x256xf32>
    %c4 = arith.constant 4 : index
    %c0_28 = arith.constant 0 : index
    %43 = vector.load %arg10[%c4, %c0_28] : memref<36x256xf32, #tpu.memory_space<vmem>>, vector<4x256xf32>
    tpu.vector_store %arg10[%c4, %c0_28], %42 {strides = array<i32>} : memref<36x256xf32, #tpu.memory_space<vmem>>, vector<4x256xf32>,
    %c0_29 = arith.constant 0 : index
    %c2 = arith.constant 2 : index
    %44 = vector.load %arg9[%c0_29, %c2] : memref<4x290xf32, #tpu.memory_space<vmem>>, vector<4x256xf32>
    %45 = vector.broadcast %32 : vector<1x256xf32> to vector<4x256xf32>
    %46 = arith.mulf %44, %45 : vector<4x256xf32>
    %c8 = arith.constant 8 : index
    %c0_30 = arith.constant 0 : index
    %47 = vector.load %arg10[%c8, %c0_30] : memref<36x256xf32, #tpu.memory_space<vmem>>, vector<4x256xf32>
    tpu.vector_store %arg10[%c8, %c0_30], %46 {strides = array<i32>} : memref<36x256xf32, #tpu.memory_space<vmem>>, vector<4x256xf32>,
    %c0_31 = arith.constant 0 : index
    %c16 = arith.constant 16 : index
    %48 = vector.load %arg9[%c0_31, %c16] : memref<4x290xf32, #tpu.memory_space<vmem>>, vector<4x256xf32>
    %49 = vector.broadcast %28 : vector<1x256xf32> to vector<4x256xf32>
    %50 = arith.mulf %48, %49 : vector<4x256xf32>
    %c12 = arith.constant 12 : index
    %c0_32 = arith.constant 0 : index
    %51 = vector.load %arg10[%c12, %c0_32] : memref<36x256xf32, #tpu.memory_space<vmem>>, vector<4x256xf32>
    tpu.vector_store %arg10[%c12, %c0_32], %50 {strides = array<i32>} : memref<36x256xf32, #tpu.memory_space<vmem>>, vector<4x256xf32>,
    %c0_33 = arith.constant 0 : index
    %c17_34 = arith.constant 17 : index
    %52 = vector.load %arg9[%c0_33, %c17_34] : memref<4x290xf32, #tpu.memory_space<vmem>>, vector<4x256xf32>
    %c16_35 = arith.constant 16 : index
    %c0_36 = arith.constant 0 : index
    %53 = vector.load %arg10[%c16_35, %c0_36] : memref<36x256xf32, #tpu.memory_space<vmem>>, vector<4x256xf32>
    tpu.vector_store %arg10[%c16_35, %c0_36], %52 {strides = array<i32>} : memref<36x256xf32, #tpu.memory_space<vmem>>, vector<4x256xf32>,
    %c0_37 = arith.constant 0 : index
    %c18 = arith.constant 18 : index
    %54 = vector.load %arg9[%c0_37, %c18] : memref<4x290xf32, #tpu.memory_space<vmem>>, vector<4x256xf32>
    %55 = vector.broadcast %32 : vector<1x256xf32> to vector<4x256xf32>
    %56 = arith.mulf %54, %55 : vector<4x256xf32>
    %c20 = arith.constant 20 : index
    %c0_38 = arith.constant 0 : index
    %57 = vector.load %arg10[%c20, %c0_38] : memref<36x256xf32, #tpu.memory_space<vmem>>, vector<4x256xf32>
    tpu.vector_store %arg10[%c20, %c0_38], %56 {strides = array<i32>} : memref<36x256xf32, #tpu.memory_space<vmem>>, vector<4x256xf32>,
    %c0_39 = arith.constant 0 : index
    %c32 = arith.constant 32 : index
    %58 = vector.load %arg9[%c0_39, %c32] : memref<4x290xf32, #tpu.memory_space<vmem>>, vector<4x256xf32>
    %59 = vector.broadcast %28 : vector<1x256xf32> to vector<4x256xf32>
    %60 = arith.mulf %58, %59 : vector<4x256xf32>
    %c24 = arith.constant 24 : index
    %c0_40 = arith.constant 0 : index
    %61 = vector.load %arg10[%c24, %c0_40] : memref<36x256xf32, #tpu.memory_space<vmem>>, vector<4x256xf32>
    tpu.vector_store %arg10[%c24, %c0_40], %60 {strides = array<i32>} : memref<36x256xf32, #tpu.memory_space<vmem>>, vector<4x256xf32>,
    %c0_41 = arith.constant 0 : index
    %c33 = arith.constant 33 : index
    %62 = vector.load %arg9[%c0_41, %c33] : memref<4x290xf32, #tpu.memory_space<vmem>>, vector<4x256xf32>
    %c28 = arith.constant 28 : index
    %c0_42 = arith.constant 0 : index
    %63 = vector.load %arg10[%c28, %c0_42] : memref<36x256xf32, #tpu.memory_space<vmem>>, vector<4x256xf32>
    tpu.vector_store %arg10[%c28, %c0_42], %62 {strides = array<i32>} : memref<36x256xf32, #tpu.memory_space<vmem>>, vector<4x256xf32>,
    %c0_43 = arith.constant 0 : index
    %c34 = arith.constant 34 : index
    %64 = vector.load %arg9[%c0_43, %c34] : memref<4x290xf32, #tpu.memory_space<vmem>>, vector<4x256xf32>
    %65 = vector.broadcast %32 : vector<1x256xf32> to vector<4x256xf32>
    %66 = arith.mulf %64, %65 : vector<4x256xf32>
    %c32_44 = arith.constant 32 : index
    %c0_45 = arith.constant 0 : index
    %67 = vector.load %arg10[%c32_44, %c0_45] : memref<36x256xf32, #tpu.memory_space<vmem>>, vector<4x256xf32>
    tpu.vector_store %arg10[%c32_44, %c0_45], %66 {strides = array<i32>} : memref<36x256xf32, #tpu.memory_space<vmem>>, vector<4x256xf32>,
    %c0_46 = arith.constant 0 : index
    %c0_47 = arith.constant 0 : index
    %68 = vector.load %arg10[%c0_46, %c0_47] : memref<36x256xf32, #tpu.memory_space<vmem>>, vector<36x256xf32>
    %cst_48 = arith.constant dense<0.000000e+00> : vector<4x256xf32>
    %69 = tpu.matmul %2, %68, %cst_48 {dimension_numbers = #tpu.dot_dimension_numbers<[1], [0], [0], [1], [0, 0, 1, 1], [], []>} : vector<4x36xf32>, vector<36x256xf32>, vector<4x256xf32> -> vector<4x256xf32>
    %70 = vector.broadcast %4 : vector<4x1xf32> to vector<4x256xf32>
    %71 = arith.mulf %69, %70 : vector<4x256xf32>
    %72 = vector.broadcast %5 : vector<4x1xf32> to vector<4x256xf32>
    %73 = arith.addf %71, %72 : vector<4x256xf32>
    %cst_49 = arith.constant 0.000000e+00 : f32
    %74 = vector.broadcast %cst_49 : f32 to vector<4x256xf32>
    %75 = arith.maximumf %73, %74 : vector<4x256xf32>
    %c0_50 = arith.constant 0 : index
    %c17_51 = arith.constant 17 : index
    %76 = vector.load %arg9[%c0_50, %c17_51] : memref<4x290xf32, #tpu.memory_space<vmem>>, vector<4x256xf32>
    tpu.vector_store %arg9[%c0_50, %c17_51], %75 {strides = array<i32>} : memref<4x290xf32, #tpu.memory_space<vmem>>, vector<4x256xf32>,
    %c0_52 = arith.constant 0 : index
    %c0_53 = arith.constant 0 : index
    %77 = vector.load %arg9[%c0_52, %c0_53] : memref<4x290xf32, #tpu.memory_space<vmem>>, vector<4x256xf32>
    %78 = vector.broadcast %28 : vector<1x256xf32> to vector<4x256xf32>
    %79 = arith.mulf %77, %78 : vector<4x256xf32>
    %c0_54 = arith.constant 0 : index
    %c0_55 = arith.constant 0 : index
    %80 = vector.load %arg10[%c0_54, %c0_55] : memref<36x256xf32, #tpu.memory_space<vmem>>, vector<4x256xf32>
    tpu.vector_store %arg10[%c0_54, %c0_55], %79 {strides = array<i32>} : memref<36x256xf32, #tpu.memory_space<vmem>>, vector<4x256xf32>,
    %c0_56 = arith.constant 0 : index
    %c1_57 = arith.constant 1 : index
    %81 = vector.load %arg9[%c0_56, %c1_57] : memref<4x290xf32, #tpu.memory_space<vmem>>, vector<4x256xf32>
    %c4_58 = arith.constant 4 : index
    %c0_59 = arith.constant 0 : index
    %82 = vector.load %arg10[%c4_58, %c0_59] : memref<36x256xf32, #tpu.memory_space<vmem>>, vector<4x256xf32>
    tpu.vector_store %arg10[%c4_58, %c0_59], %81 {strides = array<i32>} : memref<36x256xf32, #tpu.memory_space<vmem>>, vector<4x256xf32>,
    %c0_60 = arith.constant 0 : index
    %c2_61 = arith.constant 2 : index
    %83 = vector.load %arg9[%c0_60, %c2_61] : memref<4x290xf32, #tpu.memory_space<vmem>>, vector<4x256xf32>
    %84 = vector.broadcast %32 : vector<1x256xf32> to vector<4x256xf32>
    %85 = arith.mulf %83, %84 : vector<4x256xf32>
    %c8_62 = arith.constant 8 : index
    %c0_63 = arith.constant 0 : index
    %86 = vector.load %arg10[%c8_62, %c0_63] : memref<36x256xf32, #tpu.memory_space<vmem>>, vector<4x256xf32>
    tpu.vector_store %arg10[%c8_62, %c0_63], %85 {strides = array<i32>} : memref<36x256xf32, #tpu.memory_space<vmem>>, vector<4x256xf32>,
    %c0_64 = arith.constant 0 : index
    %c16_65 = arith.constant 16 : index
    %87 = vector.load %arg9[%c0_64, %c16_65] : memref<4x290xf32, #tpu.memory_space<vmem>>, vector<4x256xf32>
    %88 = vector.broadcast %28 : vector<1x256xf32> to vector<4x256xf32>
    %89 = arith.mulf %87, %88 : vector<4x256xf32>
    %c12_66 = arith.constant 12 : index
    %c0_67 = arith.constant 0 : index
    %90 = vector.load %arg10[%c12_66, %c0_67] : memref<36x256xf32, #tpu.memory_space<vmem>>, vector<4x256xf32>
    tpu.vector_store %arg10[%c12_66, %c0_67], %89 {strides = array<i32>} : memref<36x256xf32, #tpu.memory_space<vmem>>, vector<4x256xf32>,
    %c0_68 = arith.constant 0 : index
    %c17_69 = arith.constant 17 : index
    %91 = vector.load %arg9[%c0_68, %c17_69] : memref<4x290xf32, #tpu.memory_space<vmem>>, vector<4x256xf32>
    %c16_70 = arith.constant 16 : index
    %c0_71 = arith.constant 0 : index
    %92 = vector.load %arg10[%c16_70, %c0_71] : memref<36x256xf32, #tpu.memory_space<vmem>>, vector<4x256xf32>
    tpu.vector_store %arg10[%c16_70, %c0_71], %91 {strides = array<i32>} : memref<36x256xf32, #tpu.memory_space<vmem>>, vector<4x256xf32>,
    %c0_72 = arith.constant 0 : index
    %c18_73 = arith.constant 18 : index
    %93 = vector.load %arg9[%c0_72, %c18_73] : memref<4x290xf32, #tpu.memory_space<vmem>>, vector<4x256xf32>
    %94 = vector.broadcast %32 : vector<1x256xf32> to vector<4x256xf32>
    %95 = arith.mulf %93, %94 : vector<4x256xf32>
    %c20_74 = arith.constant 20 : index
    %c0_75 = arith.constant 0 : index
    %96 = vector.load %arg10[%c20_74, %c0_75] : memref<36x256xf32, #tpu.memory_space<vmem>>, vector<4x256xf32>
    tpu.vector_store %arg10[%c20_74, %c0_75], %95 {strides = array<i32>} : memref<36x256xf32, #tpu.memory_space<vmem>>, vector<4x256xf32>,
    %c0_76 = arith.constant 0 : index
    %c32_77 = arith.constant 32 : index
    %97 = vector.load %arg9[%c0_76, %c32_77] : memref<4x290xf32, #tpu.memory_space<vmem>>, vector<4x256xf32>
    %98 = vector.broadcast %28 : vector<1x256xf32> to vector<4x256xf32>
    %99 = arith.mulf %97, %98 : vector<4x256xf32>
    %c24_78 = arith.constant 24 : index
    %c0_79 = arith.constant 0 : index
    %100 = vector.load %arg10[%c24_78, %c0_79] : memref<36x256xf32, #tpu.memory_space<vmem>>, vector<4x256xf32>
    tpu.vector_store %arg10[%c24_78, %c0_79], %99 {strides = array<i32>} : memref<36x256xf32, #tpu.memory_space<vmem>>, vector<4x256xf32>,
    %c0_80 = arith.constant 0 : index
    %c33_81 = arith.constant 33 : index
    %101 = vector.load %arg9[%c0_80, %c33_81] : memref<4x290xf32, #tpu.memory_space<vmem>>, vector<4x256xf32>
    %c28_82 = arith.constant 28 : index
    %c0_83 = arith.constant 0 : index
    %102 = vector.load %arg10[%c28_82, %c0_83] : memref<36x256xf32, #tpu.memory_space<vmem>>, vector<4x256xf32>
    tpu.vector_store %arg10[%c28_82, %c0_83], %101 {strides = array<i32>} : memref<36x256xf32, #tpu.memory_space<vmem>>, vector<4x256xf32>,
    %c0_84 = arith.constant 0 : index
    %c34_85 = arith.constant 34 : index
    %103 = vector.load %arg9[%c0_84, %c34_85] : memref<4x290xf32, #tpu.memory_space<vmem>>, vector<4x256xf32>
    %104 = vector.broadcast %32 : vector<1x256xf32> to vector<4x256xf32>
    %105 = arith.mulf %103, %104 : vector<4x256xf32>
    %c32_86 = arith.constant 32 : index
    %c0_87 = arith.constant 0 : index
    %106 = vector.load %arg10[%c32_86, %c0_87] : memref<36x256xf32, #tpu.memory_space<vmem>>, vector<4x256xf32>
    tpu.vector_store %arg10[%c32_86, %c0_87], %105 {strides = array<i32>} : memref<36x256xf32, #tpu.memory_space<vmem>>, vector<4x256xf32>,
    %c0_88 = arith.constant 0 : index
    %c0_89 = arith.constant 0 : index
    %107 = vector.load %arg10[%c0_88, %c0_89] : memref<36x256xf32, #tpu.memory_space<vmem>>, vector<36x256xf32>
    %cst_90 = arith.constant dense<0.000000e+00> : vector<4x256xf32>
    %108 = tpu.matmul %3, %107, %cst_90 {dimension_numbers = #tpu.dot_dimension_numbers<[1], [0], [0], [1], [0, 0, 1, 1], [], []>} : vector<4x36xf32>, vector<36x256xf32>, vector<4x256xf32> -> vector<4x256xf32>
    %109 = vector.broadcast %6 : vector<4x1xf32> to vector<4x256xf32>
    %110 = arith.mulf %108, %109 : vector<4x256xf32>
    %111 = vector.broadcast %7 : vector<4x1xf32> to vector<4x256xf32>
    %112 = arith.addf %110, %111 : vector<4x256xf32>
    %113 = arith.addf %112, %1 : vector<4x256xf32>
    %cst_91 = arith.constant 0.000000e+00 : f32
    %114 = vector.broadcast %cst_91 : f32 to vector<4x256xf32>
    %115 = arith.maximumf %113, %114 : vector<4x256xf32>
    %c0_92 = arith.constant 0 : index
    %c0_93 = arith.constant 0 : index
    %c0_94 = arith.constant 0 : index
    %116 = vector.load %arg8[%c0_92, %c0_93, %c0_94] : memref<1x4x256xf32, #tpu.memory_space<vmem>>, vector<1x4x256xf32>
    %117 = vector.shape_cast %116 : vector<1x4x256xf32> to vector<4x256xf32>
    %118 = vector.shape_cast %115 : vector<4x256xf32> to vector<1x4x256xf32>
    tpu.vector_store %arg8[%c0_92, %c0_93, %c0_94], %118 {strides = array<i32>} : memref<1x4x256xf32, #tpu.memory_space<vmem>>, vector<1x4x256xf32>,
    return
  }
  func.func @transform_0(%arg0: i32) -> (i32, i32, i32) {
    %c0_i32 = arith.constant 0 : i32
    %c0_i32_0 = arith.constant 0 : i32
    %c0_i32_1 = arith.constant 0 : i32
    return %arg0, %c0_i32, %c0_i32_0 : i32, i32, i32
  }
  func.func @transform_1(%arg0: i32) -> (i32, i32) {
    %c0_i32 = arith.constant 0 : i32
    %c0_i32_0 = arith.constant 0 : i32
    %c0_i32_1 = arith.constant 0 : i32
    return %c0_i32, %c0_i32_0 : i32, i32
  }
  func.func @transform_2(%arg0: i32) -> (i32, i32) {
    %c0_i32 = arith.constant 0 : i32
    %c0_i32_0 = arith.constant 0 : i32
    %c0_i32_1 = arith.constant 0 : i32
    return %c0_i32, %c0_i32_0 : i32, i32
  }
  func.func @transform_3(%arg0: i32) -> (i32, i32) {
    %c0_i32 = arith.constant 0 : i32
    %c0_i32_0 = arith.constant 0 : i32
    %c0_i32_1 = arith.constant 0 : i32
    return %c0_i32, %c0_i32_0 : i32, i32
  }
  func.func @transform_4(%arg0: i32) -> (i32, i32) {
    %c0_i32 = arith.constant 0 : i32
    %c0_i32_0 = arith.constant 0 : i32
    %c0_i32_1 = arith.constant 0 : i32
    return %c0_i32, %c0_i32_0 : i32, i32
  }
  func.func @transform_5(%arg0: i32) -> (i32, i32) {
    %c0_i32 = arith.constant 0 : i32
    %c0_i32_0 = arith.constant 0 : i32
    %c0_i32_1 = arith.constant 0 : i32
    return %c0_i32, %c0_i32_0 : i32, i32
  }
  func.func @transform_6(%arg0: i32) -> (i32, i32) {
    %c0_i32 = arith.constant 0 : i32
    %c0_i32_0 = arith.constant 0 : i32
    %c0_i32_1 = arith.constant 0 : i32
    return %c0_i32, %c0_i32_0 : i32, i32
  }
  func.func @transform_7(%arg0: i32) -> (i32, i32, i32) {
    %c0_i32 = arith.constant 0 : i32
    %c0_i32_0 = arith.constant 0 : i32
    %c0_i32_1 = arith.constant 0 : i32
    return %arg0, %c0_i32, %c0_i32_0 : i32, i32, i32
  }
}

</mosaic_0001>

<llo_original>
// kernel: basic_block2d.1
$region0: #{basic_block2d.1}
  #allocation0 [shape = 'u32[]', space=smem, size = 0x4, offset = 0x4, fixed_abs, tag = 'smem constant byte address 0x4 - core index']
  #allocation1 [shape = 'u32[72,128]{1,0:T(1,128)}', space=vmem, size = 0x9000, scoped, tag = 'internal scratch']
  #allocation2 [shape = 'f32[4,290]{1,0:T(4,128)}', space=vmem, size = 0x1800, scoped, tag = 'scratch operand']
  #allocation3 [shape = 'f32[36,256]{1,0:T(8,128)}', space=vmem, size = 0xa000, scoped, tag = 'scratch operand']
  %s0 = inlined_call_operand.vmem [shape: f32[2,4,256], index: 0, kind: input, shape index: {}]
  %s1 = inlined_call_operand.vmem [shape: f32[4,36], index: 1, kind: input, shape index: {}]
  %s2 = inlined_call_operand.vmem [shape: f32[4,36], index: 2, kind: input, shape index: {}]
  %s3 = inlined_call_operand.vmem [shape: f32[4,1], index: 3, kind: input, shape index: {}]
  %s4 = inlined_call_operand.vmem [shape: f32[4,1], index: 4, kind: input, shape index: {}]
  %s5 = inlined_call_operand.vmem [shape: f32[4,1], index: 5, kind: input, shape index: {}]
  %s6 = inlined_call_operand.vmem [shape: f32[4,1], index: 6, kind: input, shape index: {}]
  %s7 = inlined_call_operand.vmem [shape: f32[2,4,256], index: 7, kind: output, shape index: {}]
  %s8 = sld [smem:[#allocation0]]
  $region61: #{basic_block2d.1} parent=0
    _
  %s10 = ssub.s32 1, %s8
  %s11 = scalar_select 0, %s10, %s8
  loop: start=0, step=1, limit=4
  $region2: #{basic_block2d.1} parent=0 // loop_pre_header
    _
  $region3: #{basic_block2d.1} parent=0 // loop_header
    %s13 = sphi 0, %s17
    %p14 = scmp.ge.s32.totalorder %s13, 4
    %s23 = sphi 0, %s25
    %s26 = sphi 0, %s23
    %s27 = sphi 0, %s26
    %s43 = sphi 0, %s27
    %s47 = sphi 0, %s47
    %s49 = sphi 0, %s47
    %s50 = sphi 0, %s49
    %s64 = sphi 0, %s50
    %s68 = sphi 0, %s68
    %s70 = sphi 0, %s68
    %s71 = sphi 0, %s70
    %s85 = sphi 0, %s71
    %s89 = sphi 0, %s89
    %s91 = sphi 0, %s89
    %s92 = sphi 0, %s91
    %s106 = sphi 0, %s92
    %s110 = sphi 0, %s110
    %s112 = sphi 0, %s110
    %s113 = sphi 0, %s112
    %s127 = sphi 0, %s113
    %s131 = sphi 0, %s131
    %s133 = sphi 0, %s131
    %s134 = sphi 0, %s133
    %s148 = sphi 0, %s134
    %s152 = sphi 0, %s152
    %s154 = sphi 0, %s152
    %s155 = sphi 0, %s154
    %s169 = sphi 0, %s155
    %s175 = sphi 0, %s177
    %s178 = sphi 0, %s175
    %s179 = sphi 0, %s178
    %s195 = sphi 0, %s179
  $region4: #{basic_block2d.1} parent=0 // loop_header_branch
    %16 = sbr.rel (%p14) target = $region8
  $region5: #{basic_block2d.1} parent=0 // loop_body
    %s18 = ssub.s32 %s13, 1
    %s19 = ssub.s32 %s13, 2
    %s20 = sadd.s32 %s13, 1
    %s21 = ssub.s32 %s13, %s20
    %p22 = scmp.eq.s32.totalorder %s21, 0
    %s24 = sadd.s32 %s23, 1
    %s25 = scalar_select %p22, %s23, %s24
    %p28 = pneg %p22
    %p29 = scmp.eq.s32.totalorder %s13, 1
    %p30 = por %p28, %p29
    %p31 = scmp.ne.s32.totalorder %s23, %s26
    %p32 = scmp.eq.s32.totalorder %s13, 0
    %p33 = por %p31, %p32
    %p34 = scmp.ne.s32.totalorder %s23, %s26
    %p35 = scmp.eq.s32.totalorder %s18, 1
    %p36 = por %p34, %p35
    %p37 = scmp.ne.s32.totalorder %s26, %s27
    %p38 = scmp.eq.s32.totalorder %s18, 0
    %p39 = por %p37, %p38
    %p40 = scmp.ne.s32.totalorder %s26, %s27
    %p41 = scmp.eq.s32.totalorder %s19, 1
    %p42 = por %p40, %p41
    %p44 = scmp.ne.s32.totalorder %s27, %s43
    %p45 = scmp.eq.s32.totalorder %s19, 0
    %p46 = por %p44, %p45
    %s48 = sadd.s32 %s47, 1
    %p51 = scmp.eq.s32.totalorder %s13, 1
    %p52 = scmp.ne.s32.totalorder %s47, %s49
    %p53 = scmp.eq.s32.totalorder %s13, 0
    %p54 = por %p52, %p53
    %p55 = scmp.ne.s32.totalorder %s47, %s49
    %p56 = scmp.eq.s32.totalorder %s18, 1
    %p57 = por %p55, %p56
    %p58 = scmp.ne.s32.totalorder %s49, %s50
    %p59 = scmp.eq.s32.totalorder %s18, 0
    %p60 = por %p58, %p59
    %p61 = scmp.ne.s32.totalorder %s49, %s50
    %p62 = scmp.eq.s32.totalorder %s19, 1
    %p63 = por %p61, %p62
    %p65 = scmp.ne.s32.totalorder %s50, %s64
    %p66 = scmp.eq.s32.totalorder %s19, 0
    %p67 = por %p65, %p66
    %s69 = sadd.s32 %s68, 1
    %p72 = scmp.eq.s32.totalorder %s13, 1
    %p73 = scmp.ne.s32.totalorder %s68, %s70
    %p74 = scmp.eq.s32.totalorder %s13, 0
    %p75 = por %p73, %p74
    %p76 = scmp.ne.s32.totalorder %s68, %s70
    %p77 = scmp.eq.s32.totalorder %s18, 1
    %p78 = por %p76, %p77
    %p79 = scmp.ne.s32.totalorder %s70, %s71
    %p80 = scmp.eq.s32.totalorder %s18, 0
    %p81 = por %p79, %p80
    %p82 = scmp.ne.s32.totalorder %s70, %s71
    %p83 = scmp.eq.s32.totalorder %s19, 1
    %p84 = por %p82, %p83
    %p86 = scmp.ne.s32.totalorder %s71, %s85
    %p87 = scmp.eq.s32.totalorder %s19, 0
    %p88 = por %p86, %p87
    %s90 = sadd.s32 %s89, 1
    %p93 = scmp.eq.s32.totalorder %s13, 1
    %p94 = scmp.ne.s32.totalorder %s89, %s91
    %p95 = scmp.eq.s32.totalorder %s13, 0
    %p96 = por %p94, %p95
    %p97 = scmp.ne.s32.totalorder %s89, %s91
    %p98 = scmp.eq.s32.totalorder %s18, 1
    %p99 = por %p97, %p98
    %p100 = scmp.ne.s32.totalorder %s91, %s92
    %p101 = scmp.eq.s32.totalorder %s18, 0
    %p102 = por %p100, %p101
    %p103 = scmp.ne.s32.totalorder %s91, %s92
    %p104 = scmp.eq.s32.totalorder %s19, 1
    %p105 = por %p103, %p104
    %p107 = scmp.ne.s32.totalorder %s92, %s106
    %p108 = scmp.eq.s32.totalorder %s19, 0
    %p109 = por %p107, %p108
    %s111 = sadd.s32 %s110, 1
    %p114 = scmp.eq.s32.totalorder %s13, 1
    %p115 = scmp.ne.s32.totalorder %s110, %s112
    %p116 = scmp.eq.s32.totalorder %s13, 0
    %p117 = por %p115, %p116
    %p118 = scmp.ne.s32.totalorder %s110, %s112
    %p119 = scmp.eq.s32.totalorder %s18, 1
    %p120 = por %p118, %p119
    %p121 = scmp.ne.s32.totalorder %s112, %s113
    %p122 = scmp.eq.s32.totalorder %s18, 0
    %p123 = por %p121, %p122
    %p124 = scmp.ne.s32.totalorder %s112, %s113
    %p125 = scmp.eq.s32.totalorder %s19, 1
    %p126 = por %p124, %p125
    %p128 = scmp.ne.s32.totalorder %s113, %s127
    %p129 = scmp.eq.s32.totalorder %s19, 0
    %p130 = por %p128, %p129
    %s132 = sadd.s32 %s131, 1
    %p135 = scmp.eq.s32.totalorder %s13, 1
    %p136 = scmp.ne.s32.totalorder %s131, %s133
    %p137 = scmp.eq.s32.totalorder %s13, 0
    %p138 = por %p136, %p137
    %p139 = scmp.ne.s32.totalorder %s131, %s133
    %p140 = scmp.eq.s32.totalorder %s18, 1
    %p141 = por %p139, %p140
    %p142 = scmp.ne.s32.totalorder %s133, %s134
    %p143 = scmp.eq.s32.totalorder %s18, 0
    %p144 = por %p142, %p143
    %p145 = scmp.ne.s32.totalorder %s133, %s134
    %p146 = scmp.eq.s32.totalorder %s19, 1
    %p147 = por %p145, %p146
    %p149 = scmp.ne.s32.totalorder %s134, %s148
    %p150 = scmp.eq.s32.totalorder %s19, 0
    %p151 = por %p149, %p150
    %s153 = sadd.s32 %s152, 1
    %p156 = scmp.eq.s32.totalorder %s13, 1
    %p157 = scmp.ne.s32.totalorder %s152, %s154
    %p158 = scmp.eq.s32.totalorder %s13, 0
    %p159 = por %p157, %p158
    %p160 = scmp.ne.s32.totalorder %s152, %s154
    %p161 = scmp.eq.s32.totalorder %s18, 1
    %p162 = por %p160, %p161
    %p163 = scmp.ne.s32.totalorder %s154, %s155
    %p164 = scmp.eq.s32.totalorder %s18, 0
    %p165 = por %p163, %p164
    %p166 = scmp.ne.s32.totalorder %s154, %s155
    %p167 = scmp.eq.s32.totalorder %s19, 1
    %p168 = por %p166, %p167
    %p170 = scmp.ne.s32.totalorder %s155, %s169
    %p171 = scmp.eq.s32.totalorder %s19, 0
    %p172 = por %p170, %p171
    %s173 = ssub.s32 %s13, %s20
    %p174 = scmp.eq.s32.totalorder %s173, 0
    %s176 = sadd.s32 %s175, 1
    %s177 = scalar_select %p174, %s175, %s176
    %p180 = pneg %p174
    %p181 = scmp.eq.s32.totalorder %s13, 1
    %p182 = por %p180, %p181
    %p183 = scmp.ne.s32.totalorder %s175, %s178
    %p184 = scmp.eq.s32.totalorder %s13, 0
    %p185 = por %p183, %p184
    %p186 = scmp.ne.s32.totalorder %s175, %s178
    %p187 = scmp.eq.s32.totalorder %s18, 1
    %p188 = por %p186, %p187
    %p189 = scmp.ne.s32.totalorder %s178, %s179
    %p190 = scmp.eq.s32.totalorder %s18, 0
    %p191 = por %p189, %p190
    %p192 = scmp.ne.s32.totalorder %s178, %s179
    %p193 = scmp.eq.s32.totalorder %s19, 1
    %p194 = por %p192, %p193
    %p196 = scmp.ne.s32.totalorder %s179, %s195
    %p197 = scmp.eq.s32.totalorder %s19, 0
    %p198 = por %p196, %p197
    %p199 = scmp.le.s32.totalorder 1, %s13
    %p200 = scmp.lt.s32.totalorder %s13, 3
    %p201 = pnand %p199, %p200
    %p202 = pneg %p201
    // Predicated region
    $region9: #{basic_block2d.1} parent=5 // pred_check
      _
    $region10: #{basic_block2d.1} parent=5 // pred_check_branch
      %204 = sbr.rel (%p201) target = $region12
    $region11: #{basic_block2d.1} parent=5 // pred_region
      %s205 = ssub.s32 %s13, 1
      // Predicated region
      $region13: #{basic_block2d.1} parent=11 // pred_check
        %p206 = pneg %p60
      $region14: #{basic_block2d.1} parent=11 // pred_check_branch
        %208 = sbr.rel (%p206) target = $region16
      $region15: #{basic_block2d.1} parent=11 // pred_region
        _
      $region16: #{basic_block2d.1} parent=11 // pred_fallthru
        _
      // Predicated region
      $region17: #{basic_block2d.1} parent=11 // pred_check
        %p209 = pneg %p81
      $region18: #{basic_block2d.1} parent=11 // pred_check_branch
        %211 = sbr.rel (%p209) target = $region20
      $region19: #{basic_block2d.1} parent=11 // pred_region
        _
      $region20: #{basic_block2d.1} parent=11 // pred_fallthru
        _
      // Predicated region
      $region21: #{basic_block2d.1} parent=11 // pred_check
        %p212 = pneg %p102
      $region22: #{basic_block2d.1} parent=11 // pred_check_branch
        %214 = sbr.rel (%p212) target = $region24
      $region23: #{basic_block2d.1} parent=11 // pred_region
        _
      $region24: #{basic_block2d.1} parent=11 // pred_fallthru
        _
      // Predicated region
      $region25: #{basic_block2d.1} parent=11 // pred_check
        %p215 = pneg %p123
      $region26: #{basic_block2d.1} parent=11 // pred_check_branch
        %217 = sbr.rel (%p215) target = $region28
      $region27: #{basic_block2d.1} parent=11 // pred_region
        _
      $region28: #{basic_block2d.1} parent=11 // pred_fallthru
        _
      // Predicated region
      $region29: #{basic_block2d.1} parent=11 // pred_check
        %p218 = pneg %p144
      $region30: #{basic_block2d.1} parent=11 // pred_check_branch
        %220 = sbr.rel (%p218) target = $region32
      $region31: #{basic_block2d.1} parent=11 // pred_region
        _
      $region32: #{basic_block2d.1} parent=11 // pred_fallthru
        _
      // Predicated region
      $region33: #{basic_block2d.1} parent=11 // pred_check
        %p221 = pneg %p165
      $region34: #{basic_block2d.1} parent=11 // pred_check_branch
        %223 = sbr.rel (%p221) target = $region36
      $region35: #{basic_block2d.1} parent=11 // pred_region
        _
      $region36: #{basic_block2d.1} parent=11 // pred_fallthru
        _
    $region12: #{basic_block2d.1} parent=5 // pred_fallthru
      _
    %p224 = scmp.lt.s32.totalorder %s13, 2
    // Predicated region
    $region37: #{basic_block2d.1} parent=5 // pred_check
      %p225 = pneg %p224
    $region38: #{basic_block2d.1} parent=5 // pred_check_branch
      %227 = sbr.rel (%p225) target = $region40
    $region39: #{basic_block2d.1} parent=5 // pred_region
      // Predicated region
      $region41: #{basic_block2d.1} parent=39 // pred_check
        %p228 = pneg %p33
      $region42: #{basic_block2d.1} parent=39 // pred_check_branch
        %230 = sbr.rel (%p228) target = $region44
      $region43: #{basic_block2d.1} parent=39 // pred_region
        %p231 = scmp.lt.s32.totalorder %s13, 1
        %s232 = scalar_select %p231, %s13, 1
        %s233 = smul.addr %s232, 2
        %s234 = smul.addr %s233, 4
        %s235 = scalar_lea.vmem %s0, %s234
      $region44: #{basic_block2d.1} parent=39 // pred_fallthru
        _
    $region40: #{basic_block2d.1} parent=5 // pred_fallthru
      _
    %p236 = scmp.le.s32.totalorder 1, %s13
    %p237 = scmp.lt.s32.totalorder %s13, 3
    %p238 = pnand %p236, %p237
    %p239 = pneg %p238
    // Predicated region
    $region45: #{basic_block2d.1} parent=5 // pred_check
      _
    $region46: #{basic_block2d.1} parent=5 // pred_check_branch
      %241 = sbr.rel (%p238) target = $region48
    $region47: #{basic_block2d.1} parent=5 // pred_region
      %s242 = ssub.s32 %s13, 1
      %p243 = scmp.lt.s32.totalorder %s18, 1
      %s244 = scalar_select %p243, %s18, 1
      %s245 = smul.addr %s244, 2
      %s246 = smul.addr %s245, 4
      %s247 = scalar_lea.vmem %s0, %s246
      %p248 = pneg %p39
      %p249 = pneg %p36
      %p250 = pneg %p60
      %p251 = pneg %p57
      %p252 = pneg %p81
      %p253 = pneg %p78
      %p254 = pneg %p102
      %p255 = pneg %p99
      %p256 = pneg %p123
      %p257 = pneg %p120
      %p258 = pneg %p144
      %p259 = pneg %p141
      %p260 = pneg %p165
      %p261 = pneg %p162
      %p262 = pneg %p191
      %p263 = pneg %p188
      %p264 = scmp.lt.s32.totalorder %s18, 1
      %s265 = scalar_select %p264, %s18, 1
      %s266 = smul.addr %s265, 2
      %s267 = smul.addr %s266, 4
      %s268 = scalar_lea.vmem %s7, %s267
      %p269 = scmp.lt.s32.totalorder %s18, 1
      %s270 = scalar_select %p269, %s18, 1
      %s271 = smul.addr %s270, 2
      %s272 = smul.addr %s271, 4
      %s273 = scalar_lea.vmem %s0, %s272
      %p274 = scmp.lt.s32.totalorder %s18, 1
      %s275 = scalar_select %p274, %s18, 1
      %s276 = smul.addr %s275, 2
      %s277 = smul.addr %s276, 4
      %s278 = scalar_lea.vmem %s7, %s277
      %v279 = vld [vmem:[%s273] sm:$0xff]
      %v280 = vld [vmem:[%s1] sm:$0xf]
      %v281 = vld [vmem:[%s2] sm:$0xf]
      %v282 = vld [vmem:[%s3] sm:$0xf]
      %v283 = vld [vmem:[%s4] sm:$0xf]
      %v284 = vld [vmem:[%s5] sm:$0xf]
      %v285 = vld [vmem:[%s6] sm:$0xf]
      %v286 = vlaneseq
      %v287 = vand.u32 %v286, 127
      %v288 = vadd.s32 %v287, 128
      %vm289 = vcmp.lt.s32.totalorder %v287, 0
      %v290 = vsub.s32 0, %v287
      %v291 = vsel %vm289, %v290, %v287
      %v292 = vshrl.u32 %v291, 4
      %v293 = vand.u32 %v291, 15
      %v294 = vsub.s32 0, %v293
      %v295 = vsel %vm289, %v294, %v293
      %vm296 = vcmp.lt.s32.totalorder %v288, 0
      %v297 = vsub.s32 0, %v288
      %v298 = vsel %vm296, %v297, %v288
      %v299 = vshrl.u32 %v298, 4
      %v300 = vand.u32 %v298, 15
      %v301 = vsub.s32 0, %v300
      %v302 = vsel %vm296, %v301, %v300
      %vm303 = vcmp.ne.s32.totalorder %v295, 0
      %vm304 = vcmp.ne.s32.totalorder %v302, 0
      %vm305 = vcmp.lt.s32.totalorder %v295, 0
      %vm306 = vcmp.lt.s32.totalorder %v302, 0
      %vm307 = vmand %vm305, %vm303
      %vm308 = vmand %vm306, %vm304
      %v309 = vadd.s32 %v295, 16
      %v310 = vadd.s32 %v302, 16
      %v311 = vsel %vm307, %v309, %v295
      %v312 = vsel %vm308, %v310, %v302
      %vm313 = vcmp.ge.s32.totalorder %v311, 1
      %vm314 = vcmp.ge.s32.totalorder %v312, 1
      %v315 = vsel %vm313, 1, 0
      %v316 = vsel %vm314, 1, 0
      %v317 = vcvt.s32.f32 %v315
      %v318 = vcvt.s32.f32 %v316
      %vm319 = vcmp.le.s32.totalorder %v311, 14
      %vm320 = vcmp.le.s32.totalorder %v312, 14
      %v321 = vsel %vm319, 1, 0
      %v322 = vsel %vm320, 1, 0
      %v323 = vcvt.s32.f32 %v321
      %v324 = vcvt.s32.f32 %v322
      %vm325 = vcmask 134144
      %326 = vst.msk [vmem:[#allocation2] sm:$0xf] %vm325, 0.0
      %vm327 = vcmask 273544
      %328 = vst.msk [vmem:[#allocation2 + $0x8] sm:$0xf] %vm327, 0.0
      %330 = vrot.lane.b32.xlu0 %v279, 17
      %v331 = vpop.permute.xlu0 %330
      %v332 = vrot.slane %v331, 4
      %vm333 = vcmask 138240
      %v334 = vsel %vm333, %v332, %v331
      %vm337 = vcmask 1043592
      %vm338 = vcmask 1047556
      %vm339 = vmor %vm338, %vm337
      %340 = vst.msk [vmem:[#allocation2] sm:$0xff] %vm339, %v334
      %341 = vst.msk [vmem:[#allocation2 + $0x8] sm:$0xf] %vm325, %v332
      %v342 = vld [vmem:[#allocation2] sm:$0xff]
      %v345 = vrot.slane %v318, 4
      %vm346 = vcmask 1043456
      %v347 = vsel %vm346, %v317, %v345
      %v349 = vmul.f32 %v342, %v347
      %351 = vst [vmem:[#allocation1] ss:$2 sm:$0xff] %v349
      %v352 = vld.sshfl [vmem:[#allocation1] sm:$0xff pattern:$0x75316420]
      %v353 = vld.sshfl [vmem:[#allocation1 + $0x8] sm:$0xff pattern:$0x75316420]
      %356 = vst [vmem:[#allocation3] sm:$0xf] %v352
      %357 = vst [vmem:[#allocation3 + $0x8] sm:$0xf] %v353
      %v358 = vld [vmem:[#allocation2] sm:$0xff]
      %v359 = vld [vmem:[#allocation2 + $0x8] sm:$0xf]
      %s362 = scalar_lea.vmem [#allocation1], 1
      %363 = vst [vmem:[%s362] ss:$2 sm:$0xff] %v358
      %s364 = scalar_lea.vmem [#allocation1], 17
      %365 = vst [vmem:[%s364] ss:$2 sm:$0xff] %v359
      %v366 = vld.sshfl [vmem:[#allocation1] sm:$0xff pattern:$0x75316420]
      %v367 = vld.sshfl [vmem:[#allocation1 + $0x8] sm:$0xff pattern:$0x75316420]
      %v368 = vld.sshfl [vmem:[#allocation1 + $0x10] sm:$0xff pattern:$0x75316420]
      %369 = vrot.lane.b32.xlu0 %v366, 127
      %v370 = vpop.permute.xlu0 %369
      %371 = vrot.lane.b32.xlu0 %v367, 127
      %v372 = vpop.permute.xlu0 %371
      %373 = vrot.lane.b32.xlu0 %v368, 127
      %v374 = vpop.permute.xlu0 %373
      %vm375 = vcmask 1039360
      %v376 = vsel %vm375, %v370, %v372
      %v377 = vsel %vm375, %v372, %v374
      %380 = vst [vmem:[#allocation3] sm:$0xf0] %v376
      %381 = vst [vmem:[#allocation3 + $0x8] sm:$0xf0] %v377
      %v382 = vld [vmem:[#allocation2] sm:$0xff]
      %v383 = vld [vmem:[#allocation2 + $0x8] sm:$0xf]
      %v386 = vrot.slane %v324, 4
      %v387 = vsel %vm346, %v323, %v386
      %388 = vrot.lane.b32.xlu0 %v387, 2
      %v389 = vpop.permute.xlu0 %388
      %v390 = vrot.slane %v389, 4
      %vm391 = vcmask 15360
      %v392 = vsel %vm391, %v390, %v389
      %v395 = vmul.f32 %v382, %v392
      %v396 = vmul.f32 %v383, %v390
      %399 = vst [vmem:[#allocation1] ss:$2 sm:$0xff] %v395
      %s400 = scalar_lea.vmem [#allocation1], 16
      %401 = vst [vmem:[%s400] ss:$2 sm:$0xff] %v396
      %v402 = vld.sshfl [vmem:[#allocation1] sm:$0xff pattern:$0x75316420]
      %v403 = vld.sshfl [vmem:[#allocation1 + $0x8] sm:$0xff pattern:$0x75316420]
      %v404 = vld.sshfl [vmem:[#allocation1 + $0x10] sm:$0xff pattern:$0x75316420]
      %405 = vrot.lane.b32.xlu0 %v402, 126
      %v406 = vpop.permute.xlu0 %405
      %407 = vrot.lane.b32.xlu0 %v403, 126
      %v408 = vpop.permute.xlu0 %407
      %409 = vrot.lane.b32.xlu0 %v404, 126
      %v410 = vpop.permute.xlu0 %409
      %vm411 = vcmask 1031168
      %v412 = vsel %vm411, %v406, %v408
      %v413 = vsel %vm411, %v408, %v410
      %416 = vst [vmem:[#allocation3 + $0x10] sm:$0xf] %v412
      %417 = vst [vmem:[#allocation3 + $0x18] sm:$0xf] %v413
      %v418 = vld [vmem:[#allocation2] sm:$0xff]
      %v419 = vld [vmem:[#allocation2 + $0x8] sm:$0xf]
      %420 = vrot.lane.b32.xlu0 %v347, 16
      %v421 = vpop.permute.xlu0 %420
      %v422 = vrot.slane %v421, 4
      %vm423 = vcmask 130048
      %v424 = vsel %vm423, %v422, %v421
      %v427 = vmul.f32 %v418, %v424
      %v428 = vmul.f32 %v419, %v422
      %s431 = scalar_lea.vmem [#allocation1], 1
      %432 = vst [vmem:[%s431] ss:$2 sm:$0xff] %v427
      %s433 = scalar_lea.vmem [#allocation1], 17
      %434 = vst [vmem:[%s433] ss:$2 sm:$0xff] %v428
      %v435 = vld.sshfl [vmem:[#allocation1] sm:$0xff pattern:$0x75316420]
      %v436 = vld.sshfl [vmem:[#allocation1 + $0x8] sm:$0xff pattern:$0x75316420]
      %v437 = vld.sshfl [vmem:[#allocation1 + $0x10] sm:$0xff pattern:$0x75316420]
      %438 = vrot.lane.b32.xlu0 %v435, 112
      %v439 = vpop.permute.xlu0 %438
      %440 = vrot.lane.b32.xlu0 %v436, 112
      %v441 = vpop.permute.xlu0 %440
      %442 = vrot.lane.b32.xlu0 %v437, 112
      %v443 = vpop.permute.xlu0 %442
      %vm444 = vcmask 916480
      %v445 = vsel %vm444, %v439, %v441
      %v446 = vsel %vm444, %v441, %v443
      %449 = vst [vmem:[#allocation3 + $0x10] sm:$0xf0] %v445
      %450 = vst [vmem:[#allocation3 + $0x18] sm:$0xf0] %v446
      %v451 = vld [vmem:[#allocation2] sm:$0xff]
      %v452 = vld [vmem:[#allocation2 + $0x8] sm:$0xf]
      %455 = vst [vmem:[#allocation1] ss:$2 sm:$0xff] %v451
      %s456 = scalar_lea.vmem [#allocation1], 16
      %457 = vst [vmem:[%s456] ss:$2 sm:$0xff] %v452
      %v458 = vld.sshfl [vmem:[#allocation1] sm:$0xff pattern:$0x75316420]
      %v459 = vld.sshfl [vmem:[#allocation1 + $0x8] sm:$0xff pattern:$0x75316420]
      %v460 = vld.sshfl [vmem:[#allocation1 + $0x10] sm:$0xff pattern:$0x75316420]
      %461 = vrot.lane.b32.xlu0 %v458, 111
      %v462 = vpop.permute.xlu0 %461
      %463 = vrot.lane.b32.xlu0 %v459, 111
      %v464 = vpop.permute.xlu0 %463
      %465 = vrot.lane.b32.xlu0 %v460, 111
      %v466 = vpop.permute.xlu0 %465
      %vm467 = vcmask 908288
      %v468 = vsel %vm467, %v462, %v464
      %v469 = vsel %vm467, %v464, %v466
      %472 = vst [vmem:[#allocation3 + $0x20] sm:$0xf] %v468
      %473 = vst [vmem:[#allocation3 + $0x28] sm:$0xf] %v469
      %v474 = vld [vmem:[#allocation2] sm:$0xff]
      %v475 = vld [vmem:[#allocation2 + $0x8] sm:$0xf]
      %476 = vrot.lane.b32.xlu0 %v387, 18
      %v477 = vpop.permute.xlu0 %476
      %v478 = vrot.slane %v477, 4
      %vm479 = vcmask 146432
      %v480 = vsel %vm479, %v478, %v477
      %v483 = vmul.f32 %v474, %v480
      %v484 = vmul.f32 %v475, %v478
      %s487 = scalar_lea.vmem [#allocation1], 1
      %488 = vst [vmem:[%s487] ss:$2 sm:$0xff] %v483
      %s489 = scalar_lea.vmem [#allocation1], 17
      %490 = vst [vmem:[%s489] ss:$2 sm:$0xff] %v484
      %v491 = vld.sshfl [vmem:[#allocation1] sm:$0xff pattern:$0x75316420]
      %v492 = vld.sshfl [vmem:[#allocation1 + $0x8] sm:$0xff pattern:$0x75316420]
      %v493 = vld.sshfl [vmem:[#allocation1 + $0x10] sm:$0xff pattern:$0x75316420]
      %494 = vrot.lane.b32.xlu0 %v491, 110
      %v495 = vpop.permute.xlu0 %494
      %496 = vrot.lane.b32.xlu0 %v492, 110
      %v497 = vpop.permute.xlu0 %496
      %498 = vrot.lane.b32.xlu0 %v493, 110
      %v499 = vpop.permute.xlu0 %498
      %vm500 = vcmask 900096
      %v501 = vsel %vm500, %v495, %v497
      %v502 = vsel %vm500, %v497, %v499
      %505 = vst [vmem:[#allocation3 + $0x20] sm:$0xf0] %v501
      %506 = vst [vmem:[#allocation3 + $0x28] sm:$0xf0] %v502
      %v507 = vld [vmem:[#allocation2] sm:$0xff]
      %v508 = vld [vmem:[#allocation2 + $0x8] sm:$0xf]
      %509 = vrot.lane.b32.xlu0 %v347, 32
      %v510 = vpop.permute.xlu0 %509
      %v511 = vrot.slane %v510, 4
      %vm512 = vcmask 261120
      %v513 = vsel %vm512, %v511, %v510
      %v516 = vmul.f32 %v507, %v513
      %v517 = vmul.f32 %v508, %v511
      %520 = vst [vmem:[#allocation1] ss:$2 sm:$0xff] %v516
      %s521 = scalar_lea.vmem [#allocation1], 16
      %522 = vst [vmem:[%s521] ss:$2 sm:$0xff] %v517
      %v523 = vld.sshfl [vmem:[#allocation1] sm:$0xff pattern:$0x75316420]
      %v524 = vld.sshfl [vmem:[#allocation1 + $0x8] sm:$0xff pattern:$0x75316420]
      %v525 = vld.sshfl [vmem:[#allocation1 + $0x10] sm:$0xff pattern:$0x75316420]
      %526 = vrot.lane.b32.xlu0 %v523, 96
      %v527 = vpop.permute.xlu0 %526
      %528 = vrot.lane.b32.xlu0 %v524, 96
      %v529 = vpop.permute.xlu0 %528
      %530 = vrot.lane.b32.xlu0 %v525, 96
      %v531 = vpop.permute.xlu0 %530
      %vm532 = vcmask 785408
      %v533 = vsel %vm532, %v527, %v529
      %v534 = vsel %vm532, %v529, %v531
      %537 = vst [vmem:[#allocation3 + $0x30] sm:$0xf] %v533
      %538 = vst [vmem:[#allocation3 + $0x38] sm:$0xf] %v534
      %v539 = vld [vmem:[#allocation2] sm:$0xff]
      %v540 = vld [vmem:[#allocation2 + $0x8] sm:$0xf]
      %s543 = scalar_lea.vmem [#allocation1], 1
      %544 = vst [vmem:[%s543] ss:$2 sm:$0xff] %v539
      %s545 = scalar_lea.vmem [#allocation1], 17
      %546 = vst [vmem:[%s545] ss:$2 sm:$0xff] %v540
      %v547 = vld.sshfl [vmem:[#allocation1] sm:$0xff pattern:$0x75316420]
      %v548 = vld.sshfl [vmem:[#allocation1 + $0x8] sm:$0xff pattern:$0x75316420]
      %v549 = vld.sshfl [vmem:[#allocation1 + $0x10] sm:$0xff pattern:$0x75316420]
      %550 = vrot.lane.b32.xlu0 %v547, 95
      %v551 = vpop.permute.xlu0 %550
      %552 = vrot.lane.b32.xlu0 %v548, 95
      %v553 = vpop.permute.xlu0 %552
      %554 = vrot.lane.b32.xlu0 %v549, 95
      %v555 = vpop.permute.xlu0 %554
      %vm556 = vcmask 777216
      %v557 = vsel %vm556, %v551, %v553
      %v558 = vsel %vm556, %v553, %v555
      %561 = vst [vmem:[#allocation3 + $0x30] sm:$0xf0] %v557
      %562 = vst [vmem:[#allocation3 + $0x38] sm:$0xf0] %v558
      %v563 = vld [vmem:[#allocation2] sm:$0xff]
      %v564 = vld [vmem:[#allocation2 + $0x8] sm:$0xf]
      %565 = vrot.lane.b32.xlu0 %v387, 34
      %v566 = vpop.permute.xlu0 %565
      %v567 = vrot.slane %v566, 4
      %vm568 = vcmask 277504
      %v569 = vsel %vm568, %v567, %v566
      %v572 = vmul.f32 %v563, %v569
      %v573 = vmul.f32 %v564, %v567
      %576 = vst [vmem:[#allocation1] ss:$2 sm:$0xff] %v572
      %s577 = scalar_lea.vmem [#allocation1], 16
      %578 = vst [vmem:[%s577] ss:$2 sm:$0xff] %v573
      %v579 = vld.sshfl [vmem:[#allocation1] sm:$0xff pattern:$0x75316420]
      %v580 = vld.sshfl [vmem:[#allocation1 + $0x8] sm:$0xff pattern:$0x75316420]
      %v581 = vld.sshfl [vmem:[#allocation1 + $0x10] sm:$0xff pattern:$0x75316420]
      %582 = vrot.lane.b32.xlu0 %v579, 94
      %v583 = vpop.permute.xlu0 %582
      %584 = vrot.lane.b32.xlu0 %v580, 94
      %v585 = vpop.permute.xlu0 %584
      %586 = vrot.lane.b32.xlu0 %v581, 94
      %v587 = vpop.permute.xlu0 %586
      %vm588 = vcmask 769024
      %v589 = vsel %vm588, %v583, %v585
      %v590 = vsel %vm588, %v585, %v587
      %593 = vst [vmem:[#allocation3 + $0x40] sm:$0xf] %v589
      %594 = vst [vmem:[#allocation3 + $0x48] sm:$0xf] %v590
      %v595 = vld [vmem:[#allocation3] sm:$0xff]
      %v596 = vld [vmem:[#allocation3 + $0x8] sm:$0xff]
      %v597 = vld [vmem:[#allocation3 + $0x10] sm:$0xff]
      %v598 = vld [vmem:[#allocation3 + $0x18] sm:$0xff]
      %v599 = vld [vmem:[#allocation3 + $0x20] sm:$0xff]
      %v600 = vld [vmem:[#allocation3 + $0x28] sm:$0xff]
      %v601 = vld [vmem:[#allocation3 + $0x30] sm:$0xff]
      %v602 = vld [vmem:[#allocation3 + $0x38] sm:$0xff]
      %v603 = vld [vmem:[#allocation3 + $0x40] sm:$0xf]
      %v604 = vld [vmem:[#allocation3 + $0x48] sm:$0xf]
      %vm605 = vcmask 293888
      %v607 = vsel %vm605, %v280, 0
      %v610 = vsel %vm346, %v603, 0
      %v613 = vsel %vm346, %v604, 0
      %615 = vmatpush.msra.mxu0 0.0
      %616 = vmatpush.msra.mxu0 0.0
      %617 = vmatpush.msra.mxu0 0.0
      %618 = vmatpush.msra.mxu0 0.0
      %619 = vmatpush.msra.mxu0 0.0
      %620 = vmatpush.msra.mxu0 0.0
      %621 = vmatpush.msra.mxu0 0.0
      %622 = vmatpush.msra.mxu0 0.0
      %623 = vmatpush.msra.mxu0 0.0
      %624 = vmatpush.msra.mxu0 0.0
      %625 = vmatpush.msra.mxu0 0.0
      %626 = vmatpush.msra.mxu0 %v610
      %627 = vmatpush.msra.mxu0 %v601
      %628 = vmatpush.msra.mxu0 %v599
      %629 = vmatpush.msra.mxu0 %v597
      %630 = vmatpush.msra.mxu0 %v595
      %631 = vmatmul.f32.gmra.mxu0 %v607
      %v632 = vpop.f32.mrf.mxu0
      %v633 = vadd.f32 0.0, %v632
      %634 = vdwg.mxu0
      %635 = vmatpush.msra.mxu0 0.0
      %636 = vmatpush.msra.mxu0 0.0
      %637 = vmatpush.msra.mxu0 0.0
      %638 = vmatpush.msra.mxu0 0.0
      %639 = vmatpush.msra.mxu0 0.0
      %640 = vmatpush.msra.mxu0 0.0
      %641 = vmatpush.msra.mxu0 0.0
      %642 = vmatpush.msra.mxu0 0.0
      %643 = vmatpush.msra.mxu0 0.0
      %644 = vmatpush.msra.mxu0 0.0
      %645 = vmatpush.msra.mxu0 0.0
      %646 = vmatpush.msra.mxu0 %v613
      %647 = vmatpush.msra.mxu0 %v602
      %648 = vmatpush.msra.mxu0 %v600
      %649 = vmatpush.msra.mxu0 %v598
      %650 = vmatpush.msra.mxu0 %v596
      %651 = vmatmul.f32.gmra.mxu0 %v607
      %v652 = vpop.f32.mrf.mxu0
      %v653 = vadd.f32 0.0, %v652
      %654 = vdwg.mxu0
      %656 = vset.pattern.permute.xlu0 0
      %657 = vperm.xlu0 %656, %v282
      %v658 = vpop.permute.xlu0 %657
      %v660 = vmul.f32 %v633, %v658
      %v661 = vmul.f32 %v653, %v658
      %663 = vset.pattern.permute.xlu0 0
      %664 = vperm.xlu0 %663, %v283
      %v665 = vpop.permute.xlu0 %664
      %v667 = vadd.f32 %v660, %v665
      %v668 = vadd.f32 %v661, %v665
      %v669 = vmax.f32 %v667, 0.0
      %v670 = vmax.f32 %v668, 0.0
      %v673 = vrot.slane %v670, 4
      %v674 = vsel %vm346, %v669, %v673
      %675 = vrot.lane.b32.xlu0 %v674, 17
      %v676 = vpop.permute.xlu0 %675
      %v677 = vrot.slane %v676, 4
      %v678 = vsel %vm333, %v677, %v676
      %681 = vst.msk [vmem:[#allocation2] sm:$0xff] %vm339, %v678
      %682 = vst.msk [vmem:[#allocation2 + $0x8] sm:$0xf] %vm325, %v677
      %v683 = vld [vmem:[#allocation2] sm:$0xff]
      %v684 = vmul.f32 %v683, %v347
      %686 = vst [vmem:[#allocation1] ss:$2 sm:$0xff] %v684
      %v687 = vld.sshfl [vmem:[#allocation1] sm:$0xff pattern:$0x75316420]
      %v688 = vld.sshfl [vmem:[#allocation1 + $0x8] sm:$0xff pattern:$0x75316420]
      %691 = vst [vmem:[#allocation3] sm:$0xf] %v687
      %692 = vst [vmem:[#allocation3 + $0x8] sm:$0xf] %v688
      %v693 = vld [vmem:[#allocation2] sm:$0xff]
      %v694 = vld [vmem:[#allocation2 + $0x8] sm:$0xf]
      %s697 = scalar_lea.vmem [#allocation1], 1
      %698 = vst [vmem:[%s697] ss:$2 sm:$0xff] %v693
      %s699 = scalar_lea.vmem [#allocation1], 17
      %700 = vst [vmem:[%s699] ss:$2 sm:$0xff] %v694
      %v701 = vld.sshfl [vmem:[#allocation1] sm:$0xff pattern:$0x75316420]
      %v702 = vld.sshfl [vmem:[#allocation1 + $0x8] sm:$0xff pattern:$0x75316420]
      %v703 = vld.sshfl [vmem:[#allocation1 + $0x10] sm:$0xff pattern:$0x75316420]
      %704 = vrot.lane.b32.xlu0 %v701, 127
      %v705 = vpop.permute.xlu0 %704
      %706 = vrot.lane.b32.xlu0 %v702, 127
      %v707 = vpop.permute.xlu0 %706
      %708 = vrot.lane.b32.xlu0 %v703, 127
      %v709 = vpop.permute.xlu0 %708
      %v710 = vsel %vm375, %v705, %v707
      %v711 = vsel %vm375, %v707, %v709
      %714 = vst [vmem:[#allocation3] sm:$0xf0] %v710
      %715 = vst [vmem:[#allocation3 + $0x8] sm:$0xf0] %v711
      %v716 = vld [vmem:[#allocation2] sm:$0xff]
      %v717 = vld [vmem:[#allocation2 + $0x8] sm:$0xf]
      %v718 = vmul.f32 %v716, %v392
      %v719 = vmul.f32 %v717, %v390
      %722 = vst [vmem:[#allocation1] ss:$2 sm:$0xff] %v718
      %s723 = scalar_lea.vmem [#allocation1], 16
      %724 = vst [vmem:[%s723] ss:$2 sm:$0xff] %v719
      %v725 = vld.sshfl [vmem:[#allocation1] sm:$0xff pattern:$0x75316420]
      %v726 = vld.sshfl [vmem:[#allocation1 + $0x8] sm:$0xff pattern:$0x75316420]
      %v727 = vld.sshfl [vmem:[#allocation1 + $0x10] sm:$0xff pattern:$0x75316420]
      %728 = vrot.lane.b32.xlu0 %v725, 126
      %v729 = vpop.permute.xlu0 %728
      %730 = vrot.lane.b32.xlu0 %v726, 126
      %v731 = vpop.permute.xlu0 %730
      %732 = vrot.lane.b32.xlu0 %v727, 126
      %v733 = vpop.permute.xlu0 %732
      %v734 = vsel %vm411, %v729, %v731
      %v735 = vsel %vm411, %v731, %v733
      %738 = vst [vmem:[#allocation3 + $0x10] sm:$0xf] %v734
      %739 = vst [vmem:[#allocation3 + $0x18] sm:$0xf] %v735
      %v740 = vld [vmem:[#allocation2] sm:$0xff]
      %v741 = vld [vmem:[#allocation2 + $0x8] sm:$0xf]
      %v742 = vmul.f32 %v740, %v424
      %v743 = vmul.f32 %v741, %v422
      %s746 = scalar_lea.vmem [#allocation1], 1
      %747 = vst [vmem:[%s746] ss:$2 sm:$0xff] %v742
      %s748 = scalar_lea.vmem [#allocation1], 17
      %749 = vst [vmem:[%s748] ss:$2 sm:$0xff] %v743
      %v750 = vld.sshfl [vmem:[#allocation1] sm:$0xff pattern:$0x75316420]
      %v751 = vld.sshfl [vmem:[#allocation1 + $0x8] sm:$0xff pattern:$0x75316420]
      %v752 = vld.sshfl [vmem:[#allocation1 + $0x10] sm:$0xff pattern:$0x75316420]
      %753 = vrot.lane.b32.xlu0 %v750, 112
      %v754 = vpop.permute.xlu0 %753
      %755 = vrot.lane.b32.xlu0 %v751, 112
      %v756 = vpop.permute.xlu0 %755
      %757 = vrot.lane.b32.xlu0 %v752, 112
      %v758 = vpop.permute.xlu0 %757
      %v759 = vsel %vm444, %v754, %v756
      %v760 = vsel %vm444, %v756, %v758
      %763 = vst [vmem:[#allocation3 + $0x10] sm:$0xf0] %v759
      %764 = vst [vmem:[#allocation3 + $0x18] sm:$0xf0] %v760
      %v765 = vld [vmem:[#allocation2] sm:$0xff]
      %v766 = vld [vmem:[#allocation2 + $0x8] sm:$0xf]
      %769 = vst [vmem:[#allocation1] ss:$2 sm:$0xff] %v765
      %s770 = scalar_lea.vmem [#allocation1], 16
      %771 = vst [vmem:[%s770] ss:$2 sm:$0xff] %v766
      %v772 = vld.sshfl [vmem:[#allocation1] sm:$0xff pattern:$0x75316420]
      %v773 = vld.sshfl [vmem:[#allocation1 + $0x8] sm:$0xff pattern:$0x75316420]
      %v774 = vld.sshfl [vmem:[#allocation1 + $0x10] sm:$0xff pattern:$0x75316420]
      %775 = vrot.lane.b32.xlu0 %v772, 111
      %v776 = vpop.permute.xlu0 %775
      %777 = vrot.lane.b32.xlu0 %v773, 111
      %v778 = vpop.permute.xlu0 %777
      %779 = vrot.lane.b32.xlu0 %v774, 111
      %v780 = vpop.permute.xlu0 %779
      %v781 = vsel %vm467, %v776, %v778
      %v782 = vsel %vm467, %v778, %v780
      %785 = vst [vmem:[#allocation3 + $0x20] sm:$0xf] %v781
      %786 = vst [vmem:[#allocation3 + $0x28] sm:$0xf] %v782
      %v787 = vld [vmem:[#allocation2] sm:$0xff]
      %v788 = vld [vmem:[#allocation2 + $0x8] sm:$0xf]
      %v789 = vmul.f32 %v787, %v480
      %v790 = vmul.f32 %v788, %v478
      %s793 = scalar_lea.vmem [#allocation1], 1
      %794 = vst [vmem:[%s793] ss:$2 sm:$0xff] %v789
      %s795 = scalar_lea.vmem [#allocation1], 17
      %796 = vst [vmem:[%s795] ss:$2 sm:$0xff] %v790
      %v797 = vld.sshfl [vmem:[#allocation1] sm:$0xff pattern:$0x75316420]
      %v798 = vld.sshfl [vmem:[#allocation1 + $0x8] sm:$0xff pattern:$0x75316420]
      %v799 = vld.sshfl [vmem:[#allocation1 + $0x10] sm:$0xff pattern:$0x75316420]
      %800 = vrot.lane.b32.xlu0 %v797, 110
      %v801 = vpop.permute.xlu0 %800
      %802 = vrot.lane.b32.xlu0 %v798, 110
      %v803 = vpop.permute.xlu0 %802
      %804 = vrot.lane.b32.xlu0 %v799, 110
      %v805 = vpop.permute.xlu0 %804
      %v806 = vsel %vm500, %v801, %v803
      %v807 = vsel %vm500, %v803, %v805
      %810 = vst [vmem:[#allocation3 + $0x20] sm:$0xf0] %v806
      %811 = vst [vmem:[#allocation3 + $0x28] sm:$0xf0] %v807
      %v812 = vld [vmem:[#allocation2] sm:$0xff]
      %v813 = vld [vmem:[#allocation2 + $0x8] sm:$0xf]
      %v814 = vmul.f32 %v812, %v513
      %v815 = vmul.f32 %v813, %v511
      %818 = vst [vmem:[#allocation1] ss:$2 sm:$0xff] %v814
      %s819 = scalar_lea.vmem [#allocation1], 16
      %820 = vst [vmem:[%s819] ss:$2 sm:$0xff] %v815
      %v821 = vld.sshfl [vmem:[#allocation1] sm:$0xff pattern:$0x75316420]
      %v822 = vld.sshfl [vmem:[#allocation1 + $0x8] sm:$0xff pattern:$0x75316420]
      %v823 = vld.sshfl [vmem:[#allocation1 + $0x10] sm:$0xff pattern:$0x75316420]
      %824 = vrot.lane.b32.xlu0 %v821, 96
      %v825 = vpop.permute.xlu0 %824
      %826 = vrot.lane.b32.xlu0 %v822, 96
      %v827 = vpop.permute.xlu0 %826
      %828 = vrot.lane.b32.xlu0 %v823, 96
      %v829 = vpop.permute.xlu0 %828
      %v830 = vsel %vm532, %v825, %v827
      %v831 = vsel %vm532, %v827, %v829
      %834 = vst [vmem:[#allocation3 + $0x30] sm:$0xf] %v830
      %835 = vst [vmem:[#allocation3 + $0x38] sm:$0xf] %v831
      %v836 = vld [vmem:[#allocation2] sm:$0xff]
      %v837 = vld [vmem:[#allocation2 + $0x8] sm:$0xf]
      %s840 = scalar_lea.vmem [#allocation1], 1
      %841 = vst [vmem:[%s840] ss:$2 sm:$0xff] %v836
      %s842 = scalar_lea.vmem [#allocation1], 17
      %843 = vst [vmem:[%s842] ss:$2 sm:$0xff] %v837
      %v844 = vld.sshfl [vmem:[#allocation1] sm:$0xff pattern:$0x75316420]
      %v845 = vld.sshfl [vmem:[#allocation1 + $0x8] sm:$0xff pattern:$0x75316420]
      %v846 = vld.sshfl [vmem:[#allocation1 + $0x10] sm:$0xff pattern:$0x75316420]
      %847 = vrot.lane.b32.xlu0 %v844, 95
      %v848 = vpop.permute.xlu0 %847
      %849 = vrot.lane.b32.xlu0 %v845, 95
      %v850 = vpop.permute.xlu0 %849
      %851 = vrot.lane.b32.xlu0 %v846, 95
      %v852 = vpop.permute.xlu0 %851
      %v853 = vsel %vm556, %v848, %v850
      %v854 = vsel %vm556, %v850, %v852
      %857 = vst [vmem:[#allocation3 + $0x30] sm:$0xf0] %v853
      %858 = vst [vmem:[#allocation3 + $0x38] sm:$0xf0] %v854
      %v859 = vld [vmem:[#allocation2] sm:$0xff]
      %v860 = vld [vmem:[#allocation2 + $0x8] sm:$0xf]
      %v861 = vmul.f32 %v859, %v569
      %v862 = vmul.f32 %v860, %v567
      %865 = vst [vmem:[#allocation1] ss:$2 sm:$0xff] %v861
      %s866 = scalar_lea.vmem [#allocation1], 16
      %867 = vst [vmem:[%s866] ss:$2 sm:$0xff] %v862
      %v868 = vld.sshfl [vmem:[#allocation1] sm:$0xff pattern:$0x75316420]
      %v869 = vld.sshfl [vmem:[#allocation1 + $0x8] sm:$0xff pattern:$0x75316420]
      %v870 = vld.sshfl [vmem:[#allocation1 + $0x10] sm:$0xff pattern:$0x75316420]
      %871 = vrot.lane.b32.xlu0 %v868, 94
      %v872 = vpop.permute.xlu0 %871
      %873 = vrot.lane.b32.xlu0 %v869, 94
      %v874 = vpop.permute.xlu0 %873
      %875 = vrot.lane.b32.xlu0 %v870, 94
      %v876 = vpop.permute.xlu0 %875
      %v877 = vsel %vm588, %v872, %v874
      %v878 = vsel %vm588, %v874, %v876
      %881 = vst [vmem:[#allocation3 + $0x40] sm:$0xf] %v877
      %882 = vst [vmem:[#allocation3 + $0x48] sm:$0xf] %v878
      %v883 = vld [vmem:[#allocation3] sm:$0xff]
      %v884 = vld [vmem:[#allocation3 + $0x8] sm:$0xff]
      %v885 = vld [vmem:[#allocation3 + $0x10] sm:$0xff]
      %v886 = vld [vmem:[#allocation3 + $0x18] sm:$0xff]
      %v887 = vld [vmem:[#allocation3 + $0x20] sm:$0xff]
      %v888 = vld [vmem:[#allocation3 + $0x28] sm:$0xff]
      %v889 = vld [vmem:[#allocation3 + $0x30] sm:$0xff]
      %v890 = vld [vmem:[#allocation3 + $0x38] sm:$0xff]
      %v891 = vld [vmem:[#allocation3 + $0x40] sm:$0xf]
      %v892 = vld [vmem:[#allocation3 + $0x48] sm:$0xf]
      %v894 = vsel %vm605, %v281, 0
      %v897 = vsel %vm346, %v891, 0
      %v900 = vsel %vm346, %v892, 0
      %902 = vmatpush.msra.mxu0 0.0
      %903 = vmatpush.msra.mxu0 0.0
      %904 = vmatpush.msra.mxu0 0.0
      %905 = vmatpush.msra.mxu0 0.0
      %906 = vmatpush.msra.mxu0 0.0
      %907 = vmatpush.msra.mxu0 0.0
      %908 = vmatpush.msra.mxu0 0.0
      %909 = vmatpush.msra.mxu0 0.0
      %910 = vmatpush.msra.mxu0 0.0
      %911 = vmatpush.msra.mxu0 0.0
      %912 = vmatpush.msra.mxu0 0.0
      %913 = vmatpush.msra.mxu0 %v897
      %914 = vmatpush.msra.mxu0 %v889
      %915 = vmatpush.msra.mxu0 %v887
      %916 = vmatpush.msra.mxu0 %v885
      %917 = vmatpush.msra.mxu0 %v883
      %918 = vmatmul.f32.gmra.mxu0 %v894
      %v919 = vpop.f32.mrf.mxu0
      %v920 = vadd.f32 0.0, %v919
      %921 = vdwg.mxu0
      %922 = vmatpush.msra.mxu0 0.0
      %923 = vmatpush.msra.mxu0 0.0
      %924 = vmatpush.msra.mxu0 0.0
      %925 = vmatpush.msra.mxu0 0.0
      %926 = vmatpush.msra.mxu0 0.0
      %927 = vmatpush.msra.mxu0 0.0
      %928 = vmatpush.msra.mxu0 0.0
      %929 = vmatpush.msra.mxu0 0.0
      %930 = vmatpush.msra.mxu0 0.0
      %931 = vmatpush.msra.mxu0 0.0
      %932 = vmatpush.msra.mxu0 0.0
      %933 = vmatpush.msra.mxu0 %v900
      %934 = vmatpush.msra.mxu0 %v890
      %935 = vmatpush.msra.mxu0 %v888
      %936 = vmatpush.msra.mxu0 %v886
      %937 = vmatpush.msra.mxu0 %v884
      %938 = vmatmul.f32.gmra.mxu0 %v894
      %v939 = vpop.f32.mrf.mxu0
      %v940 = vadd.f32 0.0, %v939
      %941 = vdwg.mxu0
      %943 = vset.pattern.permute.xlu0 0
      %944 = vperm.xlu0 %943, %v284
      %v945 = vpop.permute.xlu0 %944
      %v947 = vmul.f32 %v920, %v945
      %v948 = vmul.f32 %v940, %v945
      %950 = vset.pattern.permute.xlu0 0
      %951 = vperm.xlu0 %950, %v285
      %v952 = vpop.permute.xlu0 %951
      %v954 = vadd.f32 %v947, %v952
      %v955 = vadd.f32 %v948, %v952
      %956 = vst [vmem:[#allocation1] ss:$2 sm:$0xff] %v279
      %v957 = vld.sshfl [vmem:[#allocation1] sm:$0xff pattern:$0x75316420]
      %v958 = vld.sshfl [vmem:[#allocation1 + $0x8] sm:$0xff pattern:$0x75316420]
      %v961 = vadd.f32 %v954, %v957
      %v962 = vadd.f32 %v955, %v958
      %v963 = vmax.f32 %v961, 0.0
      %v964 = vmax.f32 %v962, 0.0
      %v967 = vrot.slane %v964, 4
      %v968 = vsel %vm346, %v963, %v967
      %970 = vst [vmem:[%s278] sm:$0xff] %v968
      %p971 = scmp.lt.s32.totalorder %s18, 1
      %s972 = scalar_select %p971, %s18, 1
      %s973 = smul.addr %s972, 2
      %s974 = smul.addr %s973, 4
      %s975 = scalar_lea.vmem %s7, %s974
      // Predicated region
      $region49: #{basic_block2d.1} parent=47 // pred_check
        %p976 = pneg %p188
      $region50: #{basic_block2d.1} parent=47 // pred_check_branch
        %978 = sbr.rel (%p976) target = $region52
      $region51: #{basic_block2d.1} parent=47 // pred_region
        _
      $region52: #{basic_block2d.1} parent=47 // pred_fallthru
        _
    $region48: #{basic_block2d.1} parent=5 // pred_fallthru
      _
    %p979 = scmp.le.s32.totalorder 2, %s13
    // Predicated region
    $region53: #{basic_block2d.1} parent=5 // pred_check
      %p980 = pneg %p979
    $region54: #{basic_block2d.1} parent=5 // pred_check_branch
      %982 = sbr.rel (%p980) target = $region56
    $region55: #{basic_block2d.1} parent=5 // pred_region
      %s983 = ssub.s32 %s13, 2
      // Predicated region
      $region57: #{basic_block2d.1} parent=55 // pred_check
        %p984 = pneg %p194
      $region58: #{basic_block2d.1} parent=55 // pred_check_branch
        %986 = sbr.rel (%p984) target = $region60
      $region59: #{basic_block2d.1} parent=55 // pred_region
        %p987 = scmp.lt.s32.totalorder %s19, 1
        %s988 = scalar_select %p987, %s19, 1
        %s989 = smul.addr %s988, 2
        %s990 = smul.addr %s989, 4
        %s991 = scalar_lea.vmem %s7, %s990
      $region60: #{basic_block2d.1} parent=55 // pred_fallthru
        _
    $region56: #{basic_block2d.1} parent=5 // pred_fallthru
      _
  $region6: #{basic_block2d.1} parent=0 // loop_footer
    %s17 = sadd.s32 1, %s13
  $region7: #{basic_block2d.1} parent=0 // loop_footer_branch
    %12 = sbr.rel target = $region3
  $region8: #{basic_block2d.1} parent=0 // loop_exit
    _

</llo_original>
